<compile_context>
chip_gen: v7x
topology: tpu7x:2x2x1
jax: 0.10.0
libtpu: 0.0.40
codegen_flags: <defaults>
</compile_context>

<pallas_src>
import functools

import jax
import jax.numpy as jnp
from jax.experimental import pallas as pl
from jax.experimental.pallas import tpu as pltpu


_MIN_GRID_STEPS = 4   # aim for >= this many grid steps (pipelining / megacore)


def _vmem_budget():
    """Return (vmem_limit_bytes, max_block_bytes) appropriate for this chip."""
    cap = None
    try:
        cap = int(getattr(pltpu.get_tpu_info(), "vmem_capacity_bytes", 0)) or None
    except Exception:
        cap = None
    if cap is None or cap <= 64 * 1024 * 1024:
        # 64 MiB VMEM part (v7x) or unknown: conservative.
        # 4 MiB blocks double-buffered in+out = ~16 MiB, ample headroom.
        return 48 * 1024 * 1024, 4 * 1024 * 1024
    # 128 MiB VMEM parts (v5e / v6e): keep more slabs on the fused path.
    return 96 * 1024 * 1024, 16 * 1024 * 1024


# ----------------------------------------------------------------------------
# Fused single-pass kernel: whole (TB, C, HW) slab per grid step
# ----------------------------------------------------------------------------

def _se_fused_kernel(x_ref, w1_ref, w2_ref, o_ref):
    # x_ref / o_ref: (TB, C, HW) with HW on the 128-lane axis.
    inv_hw = 1.0 / x_ref.shape[-1]
    # Squeeze: spatial mean, f32 accumulation.  x_ref is read again below for
    # the scale instead of keeping one block-sized f32 copy live across the
    # matmuls (saves VMEM / spills).
    y = jnp.sum(x_ref[...].astype(jnp.float32), axis=-1) * inv_hw        # (TB, C)
    # Excite: two tiny bias-free linears in f32 (matmul cost is negligible).
    h = jnp.maximum(
        jnp.dot(y, w1_ref[...], preferred_element_type=jnp.float32), 0.0)
    s = jax.nn.sigmoid(
        jnp.dot(h, w2_ref[...], preferred_element_type=jnp.float32))      # (TB, C)
    # Scale: broadcast the per-(batch, channel) gate across the HW lanes.
    o_ref[...] = (x_ref[...].astype(jnp.float32) * s[:, :, None]).astype(o_ref.dtype)


# ----------------------------------------------------------------------------
# Split path: (1) squeeze + excite streaming over HW, (2) elementwise scale
# ----------------------------------------------------------------------------

def _se_reduce_excite_kernel(x_ref, w1_ref, w2_ref, s_ref, acc_ref, *,
                             hw_total, t_hw):
    # grid = (B, n_hw); x_ref: (1, C, t_hw); s_ref: (1, C, 1); acc_ref: (1, C) f32
    t = pl.program_id(1)
    last = pl.num_programs(1) - 1

    @pl.when(t == 0)
    def _():
        acc_ref[...] = jnp.zeros_like(acc_ref)

    x = x_ref[...].astype(jnp.float32)
    if hw_total % t_hw != 0:
        # Only the last spatial tile has an out-of-bounds tail; gate the mask
        # so the full tiles run the plain (cheaper) reduce.
        @pl.when(t != last)
        def _():
            acc_ref[...] += jnp.sum(x, axis=-1)

        @pl.when(t == last)
        def _():
            pos = t * t_hw + jax.lax.broadcasted_iota(jnp.int32, x.shape, 2)
            acc_ref[...] += jnp.sum(jnp.where(pos < hw_total, x, 0.0), axis=-1)
    else:
        acc_ref[...] += jnp.sum(x, axis=-1)

    @pl.when(t == last)
    def _():
        y = acc_ref[...] * (1.0 / hw_total)                               # (1, C)
        h = jnp.maximum(
            jnp.dot(y, w1_ref[...], preferred_element_type=jnp.float32), 0.0)
        s = jax.nn.sigmoid(
            jnp.dot(h, w2_ref[...], preferred_element_type=jnp.float32))  # (1, C)
        s_ref[...] = s[:, :, None]                                        # (1, C, 1)


def _se_scale_kernel(x_ref, s_ref, o_ref):
    # x_ref / o_ref: (1, C, t_hw); s_ref: (1, C, 1) f32 gates.
    o_ref[...] = (x_ref[...].astype(jnp.float32) * s_ref[...]).astype(o_ref.dtype)


# ----------------------------------------------------------------------------
# Wrapper
# ----------------------------------------------------------------------------

def se_layer(x_nchw, w1, w2, *,
             max_block_bytes=None,
             vmem_limit_bytes=None,
             force_split=False,
             donate_x=False):
    """SELayer forward.

    x_nchw: (B, C, H, W) f32 or bf16 (bf16 recommended: the op is HBM-bound
    and bf16 I/O halves the dominant traffic; accumulation stays f32).
    w1: (C, C//r); w2: (C//r, C)  (pre-transposed PyTorch weights).
    """
    B, C, H, W = x_nchw.shape
    HW = H * W
    itemsize = jnp.dtype(x_nchw.dtype).itemsize

    auto_limit, auto_block = _vmem_budget()
    if vmem_limit_bytes is None:
        vmem_limit_bytes = auto_limit
    if max_block_bytes is None:
        max_block_bytes = auto_block

    def compiler_params(sem):
        return pltpu.CompilerParams(
            dimension_semantics=sem, vmem_limit_bytes=vmem_limit_bytes)

    io_alias = {0: 0} if donate_x else {}

    x = x_nchw.reshape(B, C, HW)        # free view of NCHW; HW on the lane axis
    slab_bytes = C * HW * itemsize
    fused = (not force_split) and (slab_bytes <= max_block_bytes)

    if fused:
        # Several images per grid step, but keep >= _MIN_GRID_STEPS steps so
        # double-buffering can hide the HBM DMA behind compute.  cdiv grid:
        # a partial last batch block is fine (rows are independent, OOB rows
        # are garbage-in/garbage-out and masked on the store).
        tb = max(1, min(max_block_bytes // slab_bytes,
                        pl.cdiv(B, _MIN_GRID_STEPS)))
        grid_b = pl.cdiv(B, tb)
        block = (tb, C, HW)

        out = pl.pallas_call(
            _se_fused_kernel,
            out_shape=jax.ShapeDtypeStruct((B, C, HW), x.dtype),
            grid_spec=pltpu.PrefetchScalarGridSpec(
                num_scalar_prefetch=0,
                grid=(grid_b,),
                in_specs=[
                    pl.BlockSpec(block, lambda b: (b, 0, 0)),
                    pl.BlockSpec(w1.shape, lambda b: (0, 0)),
                    pl.BlockSpec(w2.shape, lambda b: (0, 0)),
                ],
                out_specs=pl.BlockSpec(block, lambda b: (b, 0, 0)),
            ),
            compiler_params=compiler_params(("parallel",)),
            input_output_aliases=io_alias,
        )(x, w1, w2)
        return out.reshape(B, C, H, W)

    # ---------------- split path (slab does not fit the block budget) --------
    # Spatial (lane) tile: a multiple of 128 sized to the block budget.
    t_hw = min(HW, max(128, (max_block_bytes // (C * itemsize) // 128) * 128))
    n_hw = pl.cdiv(HW, t_hw)

    # Kernel 1: streamed squeeze + excite -> gates (B, C, 1) f32.
    gates = pl.pallas_call(
        functools.partial(_se_reduce_excite_kernel, hw_total=HW, t_hw=t_hw),
        out_shape=jax.ShapeDtypeStruct((B, C, 1), jnp.float32),
        grid_spec=pltpu.PrefetchScalarGridSpec(
            num_scalar_prefetch=0,
            grid=(B, n_hw),                       # HW (reduction) axis innermost
            in_specs=[
                pl.BlockSpec((1, C, t_hw), lambda b, t: (b, 0, t)),
                pl.BlockSpec(w1.shape, lambda b, t: (0, 0)),
                pl.BlockSpec(w2.shape, lambda b, t: (0, 0)),
            ],
            out_specs=pl.BlockSpec((1, C, 1), lambda b, t: (b, 0, 0)),
            scratch_shapes=[pltpu.VMEM((1, C), jnp.float32)],
        ),
        compiler_params=compiler_params(("parallel", "arbitrary")),
    )(x, w1, w2)

    # Kernel 2: elementwise scale, fully parallel tiling.
    out = pl.pallas_call(
        _se_scale_kernel,
        out_shape=jax.ShapeDtypeStruct((B, C, HW), x.dtype),
        grid_spec=pltpu.PrefetchScalarGridSpec(
            num_scalar_prefetch=0,
            grid=(B, n_hw),
            in_specs=[
                pl.BlockSpec((1, C, t_hw), lambda b, t: (b, 0, t)),
                pl.BlockSpec((1, C, 1), lambda b, t: (b, 0, 0)),
            ],
            out_specs=pl.BlockSpec((1, C, t_hw), lambda b, t: (b, 0, t)),
        ),
        compiler_params=compiler_params(("parallel", "parallel")),
        input_output_aliases=io_alias,
    )(x, gates)

    return out.reshape(B, C, H, W)


def reference_se(x_nchw, w1, w2):
    # Pure-JAX reference for validation (f32 math).
    x = x_nchw.astype(jnp.float32)
    y = jnp.mean(x, axis=(2, 3))                         # (B, C)
    h = jnp.maximum(y @ w1, 0.0)                         # (B, Cr)
    s = jax.nn.sigmoid(h @ w2)                           # (B, C)
    return x * s[:, :, None, None]


if __name__ == "__main__":
    key = jax.random.PRNGKey(0)
    k = jax.random.split(key, 6)

    # --- Test 1: toy shape matching SELayer(channel=10, reduction=5) --------
    B, C, H, W = 2, 10, 16, 16
    Cr = C // 5
    x = jax.random.normal(k[0], (B, C, H, W), dtype=jnp.float32)
    w1 = jax.random.normal(k[1], (C, Cr), dtype=jnp.float32) * 0.3
    w2 = jax.random.normal(k[2], (Cr, C), dtype=jnp.float32) * 0.3
    out = se_layer(x, w1, w2)
    jax.block_until_ready(out)
    ref = reference_se(x, w1, w2)
    assert out.shape == (B, C, H, W)
    assert jnp.allclose(out, ref, atol=1e-5, rtol=1e-5), "toy fused mismatch"

    # --- Test 2: fused path with batch blocking and a partial last block ----
    B2, C2, H2, W2 = 7, 128, 16, 16       # tb=2 -> grid=4, last block ragged
    Cr2 = C2 // 4
    x2 = jax.random.normal(k[3], (B2, C2, H2, W2), dtype=jnp.float32)
    w1b = jax.random.normal(k[4], (C2, Cr2), dtype=jnp.float32) * 0.1
    w2b = jax.random.normal(k[5], (Cr2, C2), dtype=jnp.float32) * 0.1
    out2 = se_layer(x2, w1b, w2b)
    jax.block_until_ready(out2)
    ref2 = reference_se(x2, w1b, w2b)
    assert jnp.allclose(out2, ref2, atol=1e-4, rtol=1e-4), "fused path mismatch"

    # --- Test 3: forced two-kernel split path with a ragged spatial tile ----
    B3, C3, H3, W3 = 2, 128, 10, 20       # HW = 200 -> lane tiles 128 + 72
    x3 = jax.random.normal(k[3], (B3, C3, H3, W3), dtype=jnp.float32)
    out3 = se_layer(x3, w1b, w2b, max_block_bytes=16 * 1024, force_split=True)
    jax.block_until_ready(out3)
    ref3 = reference_se(x3, w1b, w2b)
    assert jnp.allclose(out3, ref3, atol=1e-4, rtol=1e-4), "split path mismatch"

    # --- Test 4: bf16 I/O path (halves HBM traffic; f32 accumulation) -------
    xb = x2.astype(jnp.bfloat16)
    outb = se_layer(xb, w1b, w2b)
    jax.block_until_ready(outb)
    refb = reference_se(xb, w1b, w2b)
    assert outb.dtype == jnp.bfloat16
    assert jnp.allclose(outb.astype(jnp.float32), refb, atol=5e-2, rtol=5e-2), \
        "bf16 path mismatch"

    print("KERNEL_OK")
</pallas_src>

<mosaic_0001>
module attributes {stable_mosaic.version = 11 : i64} {
  func.func @_se_fused_kernel(%arg0: i32, %arg1: memref<1x10x256xf32, #tpu.memory_space<vmem>>, %arg2: memref<10x2xf32, #tpu.memory_space<vmem>>, %arg3: memref<2x10xf32, #tpu.memory_space<vmem>>, %arg4: memref<1x10x256xf32, #tpu.memory_space<vmem>>) attributes {dimension_semantics = [#tpu.dimension_semantics<parallel>], iteration_bounds = array<i64: 2>, scalar_prefetch = 0 : i64, scratch_operands = 0 : i64, tpu.core_type = #tpu.core_type<tc>, window_params = [{transform_indices = @transform_0, window_bounds = array<i64: 1, 10, 256>}, {pipeline_mode = #tpu.pipeline_mode<synchronous>, transform_indices = @transform_1, window_bounds = array<i64: 10, 2>}, {pipeline_mode = #tpu.pipeline_mode<synchronous>, transform_indices = @transform_2, window_bounds = array<i64: 2, 10>}, {transform_indices = @transform_3, window_bounds = array<i64: 1, 10, 256>}]} {
    %c0 = arith.constant 0 : index
    %c0_0 = arith.constant 0 : index
    %c0_1 = arith.constant 0 : index
    %0 = vector.load %arg1[%c0, %c0_0, %c0_1] : memref<1x10x256xf32, #tpu.memory_space<vmem>>, vector<1x10x256xf32>
    %cst = arith.constant dense<0.000000e+00> : vector<1x10xf32>
    %1 = vector.multi_reduction <add>, %0, %cst [2] : vector<1x10x256xf32> to vector<1x10xf32>
    %cst_2 = arith.constant 3.906250e-03 : f32
    %2 = vector.broadcast %cst_2 : f32 to vector<1x10xf32>
    %3 = arith.mulf %1, %2 : vector<1x10xf32>
    %c0_3 = arith.constant 0 : index
    %c0_4 = arith.constant 0 : index
    %4 = vector.load %arg2[%c0_3, %c0_4] : memref<10x2xf32, #tpu.memory_space<vmem>>, vector<10x2xf32>
    %cst_5 = arith.constant dense<0.000000e+00> : vector<1x2xf32>
    %5 = tpu.matmul %3, %4, %cst_5 {dimension_numbers = #tpu.dot_dimension_numbers<[1], [0], [0], [1], [0, 0, 1, 1], [], []>} : vector<1x10xf32>, vector<10x2xf32>, vector<1x2xf32> -> vector<1x2xf32>
    %cst_6 = arith.constant 0.000000e+00 : f32
    %6 = vector.broadcast %cst_6 : f32 to vector<1x2xf32>
    %7 = arith.maximumf %5, %6 : vector<1x2xf32>
    %c0_7 = arith.constant 0 : index
    %c0_8 = arith.constant 0 : index
    %8 = vector.load %arg3[%c0_7, %c0_8] : memref<2x10xf32, #tpu.memory_space<vmem>>, vector<2x10xf32>
    %cst_9 = arith.constant dense<0.000000e+00> : vector<1x10xf32>
    %9 = tpu.matmul %7, %8, %cst_9 {dimension_numbers = #tpu.dot_dimension_numbers<[1], [0], [0], [1], [0, 0, 1, 1], [], []>} : vector<1x2xf32>, vector<2x10xf32>, vector<1x10xf32> -> vector<1x10xf32>
    %10 = arith.negf %9 : vector<1x10xf32>
    %11 = math.exp %10 : vector<1x10xf32>
    %cst_10 = arith.constant 1.000000e+00 : f32
    %12 = vector.broadcast %cst_10 : f32 to vector<1x10xf32>
    %13 = arith.addf %12, %11 : vector<1x10xf32>
    %14 = arith.divf %12, %13 : vector<1x10xf32>
    %c0_11 = arith.constant 0 : index
    %c0_12 = arith.constant 0 : index
    %c0_13 = arith.constant 0 : index
    %15 = vector.load %arg1[%c0_11, %c0_12, %c0_13] : memref<1x10x256xf32, #tpu.memory_space<vmem>>, vector<1x10x256xf32>
    %16 = vector.shape_cast %14 : vector<1x10xf32> to vector<1x10x1xf32>
    %17 = vector.broadcast %16 : vector<1x10x1xf32> to vector<1x10x256xf32>
    %18 = arith.mulf %15, %17 : vector<1x10x256xf32>
    %c0_14 = arith.constant 0 : index
    %c0_15 = arith.constant 0 : index
    %c0_16 = arith.constant 0 : index
    %19 = vector.load %arg4[%c0_14, %c0_15, %c0_16] : memref<1x10x256xf32, #tpu.memory_space<vmem>>, vector<1x10x256xf32>
    tpu.vector_store %arg4[%c0_14, %c0_15, %c0_16], %18 {strides = array<i32>} : memref<1x10x256xf32, #tpu.memory_space<vmem>>, vector<1x10x256xf32>,
    return
  }
  func.func @transform_0(%arg0: i32) -> (i32, i32, i32) {
    %c0_i32 = arith.constant 0 : i32
    %c0_i32_0 = arith.constant 0 : i32
    %c0_i32_1 = arith.constant 0 : i32
    return %arg0, %c0_i32, %c0_i32_0 : i32, i32, i32
  }
  func.func @transform_1(%arg0: i32) -> (i32, i32) {
    %c0_i32 = arith.constant 0 : i32
    %c0_i32_0 = arith.constant 0 : i32
    %c0_i32_1 = arith.constant 0 : i32
    return %c0_i32, %c0_i32_0 : i32, i32
  }
  func.func @transform_2(%arg0: i32) -> (i32, i32) {
    %c0_i32 = arith.constant 0 : i32
    %c0_i32_0 = arith.constant 0 : i32
    %c0_i32_1 = arith.constant 0 : i32
    return %c0_i32, %c0_i32_0 : i32, i32
  }
  func.func @transform_3(%arg0: i32) -> (i32, i32, i32) {
    %c0_i32 = arith.constant 0 : i32
    %c0_i32_0 = arith.constant 0 : i32
    %c0_i32_1 = arith.constant 0 : i32
    return %arg0, %c0_i32, %c0_i32_0 : i32, i32, i32
  }
}

</mosaic_0001>

<llo_original>
// kernel: tpu_custom_call.1
$region0: #{tpu_custom_call.1}
  #allocation0 [shape = 'u32[]', space=smem, size = 0x4, offset = 0x4, fixed_abs, tag = 'smem constant byte address 0x4 - core index']
  #allocation1 [shape = 'u32[144,128]{1,0:T(1,128)}', space=vmem, size = 0x12000, scoped, tag = 'internal scratch']
  %s0 = inlined_call_operand.vmem [shape: f32[2,10,256], index: 0, kind: input, shape index: {}]
  %s1 = inlined_call_operand.vmem [shape: f32[10,2], index: 1, kind: input, shape index: {}]
  %s2 = inlined_call_operand.vmem [shape: f32[2,10], index: 2, kind: input, shape index: {}]
  %s3 = inlined_call_operand.vmem [shape: f32[2,10,256], index: 3, kind: output, shape index: {}]
  %s4 = sld [smem:[#allocation0]]
  $region45: #{tpu_custom_call.1} parent=0
    _
  %s6 = ssub.s32 1, %s4
  %s7 = scalar_select 0, %s6, %s4
  loop: start=0, step=1, limit=4
  $region2: #{tpu_custom_call.1} parent=0 // loop_pre_header
    _
  $region3: #{tpu_custom_call.1} parent=0 // loop_header
    %s9 = sphi 0, %s13
    %p10 = scmp.ge.s32.totalorder %s9, 4
    %s19 = sphi 0, %s21
    %s22 = sphi 0, %s19
    %s23 = sphi 0, %s22
    %s39 = sphi 0, %s23
    %s43 = sphi 0, %s43
    %s45 = sphi 0, %s43
    %s46 = sphi 0, %s45
    %s60 = sphi 0, %s46
    %s64 = sphi 0, %s64
    %s66 = sphi 0, %s64
    %s67 = sphi 0, %s66
    %s81 = sphi 0, %s67
    %s87 = sphi 0, %s89
    %s90 = sphi 0, %s87
    %s91 = sphi 0, %s90
    %s107 = sphi 0, %s91
  $region4: #{tpu_custom_call.1} parent=0 // loop_header_branch
    %12 = sbr.rel (%p10) target = $region8
  $region5: #{tpu_custom_call.1} parent=0 // loop_body
    %s14 = ssub.s32 %s9, 1
    %s15 = ssub.s32 %s9, 2
    %s16 = sadd.s32 %s9, 1
    %s17 = ssub.s32 %s9, %s16
    %p18 = scmp.eq.s32.totalorder %s17, 0
    %s20 = sadd.s32 %s19, 1
    %s21 = scalar_select %p18, %s19, %s20
    %p24 = pneg %p18
    %p25 = scmp.eq.s32.totalorder %s9, 1
    %p26 = por %p24, %p25
    %p27 = scmp.ne.s32.totalorder %s19, %s22
    %p28 = scmp.eq.s32.totalorder %s9, 0
    %p29 = por %p27, %p28
    %p30 = scmp.ne.s32.totalorder %s19, %s22
    %p31 = scmp.eq.s32.totalorder %s14, 1
    %p32 = por %p30, %p31
    %p33 = scmp.ne.s32.totalorder %s22, %s23
    %p34 = scmp.eq.s32.totalorder %s14, 0
    %p35 = por %p33, %p34
    %p36 = scmp.ne.s32.totalorder %s22, %s23
    %p37 = scmp.eq.s32.totalorder %s15, 1
    %p38 = por %p36, %p37
    %p40 = scmp.ne.s32.totalorder %s23, %s39
    %p41 = scmp.eq.s32.totalorder %s15, 0
    %p42 = por %p40, %p41
    %s44 = sadd.s32 %s43, 1
    %p47 = scmp.eq.s32.totalorder %s9, 1
    %p48 = scmp.ne.s32.totalorder %s43, %s45
    %p49 = scmp.eq.s32.totalorder %s9, 0
    %p50 = por %p48, %p49
    %p51 = scmp.ne.s32.totalorder %s43, %s45
    %p52 = scmp.eq.s32.totalorder %s14, 1
    %p53 = por %p51, %p52
    %p54 = scmp.ne.s32.totalorder %s45, %s46
    %p55 = scmp.eq.s32.totalorder %s14, 0
    %p56 = por %p54, %p55
    %p57 = scmp.ne.s32.totalorder %s45, %s46
    %p58 = scmp.eq.s32.totalorder %s15, 1
    %p59 = por %p57, %p58
    %p61 = scmp.ne.s32.totalorder %s46, %s60
    %p62 = scmp.eq.s32.totalorder %s15, 0
    %p63 = por %p61, %p62
    %s65 = sadd.s32 %s64, 1
    %p68 = scmp.eq.s32.totalorder %s9, 1
    %p69 = scmp.ne.s32.totalorder %s64, %s66
    %p70 = scmp.eq.s32.totalorder %s9, 0
    %p71 = por %p69, %p70
    %p72 = scmp.ne.s32.totalorder %s64, %s66
    %p73 = scmp.eq.s32.totalorder %s14, 1
    %p74 = por %p72, %p73
    %p75 = scmp.ne.s32.totalorder %s66, %s67
    %p76 = scmp.eq.s32.totalorder %s14, 0
    %p77 = por %p75, %p76
    %p78 = scmp.ne.s32.totalorder %s66, %s67
    %p79 = scmp.eq.s32.totalorder %s15, 1
    %p80 = por %p78, %p79
    %p82 = scmp.ne.s32.totalorder %s67, %s81
    %p83 = scmp.eq.s32.totalorder %s15, 0
    %p84 = por %p82, %p83
    %s85 = ssub.s32 %s9, %s16
    %p86 = scmp.eq.s32.totalorder %s85, 0
    %s88 = sadd.s32 %s87, 1
    %s89 = scalar_select %p86, %s87, %s88
    %p92 = pneg %p86
    %p93 = scmp.eq.s32.totalorder %s9, 1
    %p94 = por %p92, %p93
    %p95 = scmp.ne.s32.totalorder %s87, %s90
    %p96 = scmp.eq.s32.totalorder %s9, 0
    %p97 = por %p95, %p96
    %p98 = scmp.ne.s32.totalorder %s87, %s90
    %p99 = scmp.eq.s32.totalorder %s14, 1
    %p100 = por %p98, %p99
    %p101 = scmp.ne.s32.totalorder %s90, %s91
    %p102 = scmp.eq.s32.totalorder %s14, 0
    %p103 = por %p101, %p102
    %p104 = scmp.ne.s32.totalorder %s90, %s91
    %p105 = scmp.eq.s32.totalorder %s15, 1
    %p106 = por %p104, %p105
    %p108 = scmp.ne.s32.totalorder %s91, %s107
    %p109 = scmp.eq.s32.totalorder %s15, 0
    %p110 = por %p108, %p109
    %p111 = scmp.le.s32.totalorder 1, %s9
    %p112 = scmp.lt.s32.totalorder %s9, 3
    %p113 = pnand %p111, %p112
    %p114 = pneg %p113
    // Predicated region
    $region9: #{tpu_custom_call.1} parent=5 // pred_check
      _
    $region10: #{tpu_custom_call.1} parent=5 // pred_check_branch
      %116 = sbr.rel (%p113) target = $region12
    $region11: #{tpu_custom_call.1} parent=5 // pred_region
      %s117 = ssub.s32 %s9, 1
      // Predicated region
      $region13: #{tpu_custom_call.1} parent=11 // pred_check
        %p118 = pneg %p56
      $region14: #{tpu_custom_call.1} parent=11 // pred_check_branch
        %120 = sbr.rel (%p118) target = $region16
      $region15: #{tpu_custom_call.1} parent=11 // pred_region
        _
      $region16: #{tpu_custom_call.1} parent=11 // pred_fallthru
        _
      // Predicated region
      $region17: #{tpu_custom_call.1} parent=11 // pred_check
        %p121 = pneg %p77
      $region18: #{tpu_custom_call.1} parent=11 // pred_check_branch
        %123 = sbr.rel (%p121) target = $region20
      $region19: #{tpu_custom_call.1} parent=11 // pred_region
        _
      $region20: #{tpu_custom_call.1} parent=11 // pred_fallthru
        _
    $region12: #{tpu_custom_call.1} parent=5 // pred_fallthru
      _
    %p124 = scmp.lt.s32.totalorder %s9, 2
    // Predicated region
    $region21: #{tpu_custom_call.1} parent=5 // pred_check
      %p125 = pneg %p124
    $region22: #{tpu_custom_call.1} parent=5 // pred_check_branch
      %127 = sbr.rel (%p125) target = $region24
    $region23: #{tpu_custom_call.1} parent=5 // pred_region
      // Predicated region
      $region25: #{tpu_custom_call.1} parent=23 // pred_check
        %p128 = pneg %p29
      $region26: #{tpu_custom_call.1} parent=23 // pred_check_branch
        %130 = sbr.rel (%p128) target = $region28
      $region27: #{tpu_custom_call.1} parent=23 // pred_region
        %p131 = scmp.lt.s32.totalorder %s9, 1
        %s132 = scalar_select %p131, %s9, 1
        %s133 = smul.addr %s132, 4
        %s134 = smul.addr %s133, 8
        %s135 = scalar_lea.vmem %s0, %s134
      $region28: #{tpu_custom_call.1} parent=23 // pred_fallthru
        _
    $region24: #{tpu_custom_call.1} parent=5 // pred_fallthru
      _
    %p136 = scmp.le.s32.totalorder 1, %s9
    %p137 = scmp.lt.s32.totalorder %s9, 3
    %p138 = pnand %p136, %p137
    %p139 = pneg %p138
    // Predicated region
    $region29: #{tpu_custom_call.1} parent=5 // pred_check
      _
    $region30: #{tpu_custom_call.1} parent=5 // pred_check_branch
      %141 = sbr.rel (%p138) target = $region32
    $region31: #{tpu_custom_call.1} parent=5 // pred_region
      %s142 = ssub.s32 %s9, 1
      %p143 = scmp.lt.s32.totalorder %s14, 1
      %s144 = scalar_select %p143, %s14, 1
      %s145 = smul.addr %s144, 4
      %s146 = smul.addr %s145, 8
      %s147 = scalar_lea.vmem %s0, %s146
      %p148 = pneg %p35
      %p149 = pneg %p32
      %p150 = pneg %p56
      %p151 = pneg %p53
      %p152 = pneg %p77
      %p153 = pneg %p74
      %p154 = pneg %p103
      %p155 = pneg %p100
      %p156 = scmp.lt.s32.totalorder %s14, 1
      %s157 = scalar_select %p156, %s14, 1
      %s158 = smul.addr %s157, 4
      %s159 = smul.addr %s158, 8
      %s160 = scalar_lea.vmem %s3, %s159
      %p161 = scmp.lt.s32.totalorder %s14, 1
      %s162 = scalar_select %p161, %s14, 1
      %s163 = smul.addr %s162, 4
      %s164 = smul.addr %s163, 8
      %s165 = scalar_lea.vmem %s0, %s164
      %p166 = scmp.lt.s32.totalorder %s14, 1
      %s167 = scalar_select %p166, %s14, 1
      %s168 = smul.addr %s167, 4
      %s169 = smul.addr %s168, 8
      %s170 = scalar_lea.vmem %s3, %s169
      %v171 = vld [vmem:[%s165] sm:$0xff]
      %v172 = vld [vmem:[%s165 + $0x8] sm:$0xff]
      %v173 = vld [vmem:[%s165 + $0x10] sm:$0x3]
      %v174 = vld [vmem:[%s165 + $0x18] sm:$0x3]
      %v175 = vadd.f32 %v171, %v172
      %176 = vadd.xlane.f32.xlu0 %v175
      %v177 = vpop.xlane.xlu0 %176
      %vm178 = vcmask 1041408
      %v179 = vsel %vm178, %v173, 0.0
      %v180 = vsel %vm178, %v174, 0.0
      %v181 = vadd.f32 %v179, %v180
      %182 = vadd.xlane.f32.xlu0 %v181
      %v183 = vpop.xlane.xlu0 %182
      %v184 = vmul.f32 %v177, 0.00390625
      %v185 = vmul.f32 %v183, 0.00390625
      %v186 = vld [vmem:[%s1] sm:$0xff]
      %v187 = vld [vmem:[%s1 + $0x8] sm:$0x3]
      %v190 = vlaneseq
      %v191 = vand.u32 %v190, 127
      %v192 = vlaneseq
      %v193 = vshrl.u32 %v192, 7
      %v194 = vsub.s32 %v191, %v193
      %v195 = vrot.slane %v184, %v194
      %v196 = vadd.s32 %v191, 4294967288
      %v197 = vlaneseq
      %v198 = vshrl.u32 %v197, 7
      %v199 = vsub.s32 %v196, %v198
      %v200 = vrot.slane %v185, %v199
      %vm201 = vcmask 130112
      %v202 = vsel %vm201, %v200, %v195
      %vm203 = vcmask 80896
      %v204 = vsel %vm203, %v202, 0
      %v207 = vsel %vm178, %v187, 0
      %209 = vmatprep.subr.mxu0 0.0
      %210 = vmatpush1.msra.mxu0 %v186
      %211 = vmatprep.subr.mxu0 0.0
      %212 = vmatpush1.msra.mxu0 %v207
      %213 = vmatprep.subr.mxu0 0.0
      %214 = vmatpush1.msra.mxu0 0.0
      %215 = vmatprep.subr.mxu0 0.0
      %216 = vmatpush1.msra.mxu0 0.0
      %217 = vmatprep.subr.mxu0 0.0
      %218 = vmatpush1.msra.mxu0 0.0
      %219 = vmatprep.subr.mxu0 0.0
      %220 = vmatpush1.msra.mxu0 0.0
      %221 = vmatprep.subr.mxu0 0.0
      %222 = vmatpush1.msra.mxu0 0.0
      %223 = vmatprep.subr.mxu0 0.0
      %224 = vmatpush1.msra.mxu0 0.0
      %225 = vmatprep.subr.mxu0 0.0
      %226 = vmatpush1.msra.mxu0 0.0
      %227 = vmatprep.subr.mxu0 0.0
      %228 = vmatpush1.msra.mxu0 0.0
      %229 = vmatprep.subr.mxu0 0.0
      %230 = vmatpush1.msra.mxu0 0.0
      %231 = vmatprep.subr.mxu0 0.0
      %232 = vmatpush1.msra.mxu0 0.0
      %233 = vmatprep.subr.mxu0 0.0
      %234 = vmatpush1.msra.mxu0 0.0
      %235 = vmatprep.subr.mxu0 0.0
      %236 = vmatpush1.msra.mxu0 0.0
      %237 = vmatprep.subr.mxu0 0.0
      %238 = vmatpush1.msra.mxu0 0.0
      %239 = vmatprep.subr.mxu0 0.0
      %240 = vmatpush1.msra.mxu0 0.0
      %241 = vmatprep.subr.mxu0 0.0
      %242 = vmatpush1.msra.mxu0 0.0
      %243 = vmatprep.subr.mxu0 0.0
      %244 = vmatpush1.msra.mxu0 0.0
      %245 = vmatprep.subr.mxu0 0.0
      %246 = vmatpush1.msra.mxu0 0.0
      %247 = vmatprep.subr.mxu0 0.0
      %248 = vmatpush1.msra.mxu0 0.0
      %249 = vmatprep.subr.mxu0 0.0
      %250 = vmatpush1.msra.mxu0 0.0
      %251 = vmatprep.subr.mxu0 0.0
      %252 = vmatpush1.msra.mxu0 0.0
      %253 = vmatprep.subr.mxu0 0.0
      %254 = vmatpush1.msra.mxu0 0.0
      %255 = vmatprep.subr.mxu0 0.0
      %256 = vmatpush1.msra.mxu0 0.0
      %257 = vmatprep.subr.mxu0 0.0
      %258 = vmatpush1.msra.mxu0 0.0
      %259 = vmatprep.subr.mxu0 0.0
      %260 = vmatpush1.msra.mxu0 0.0
      %261 = vmatprep.subr.mxu0 0.0
      %262 = vmatpush1.msra.mxu0 0.0
      %263 = vmatprep.subr.mxu0 0.0
      %264 = vmatpush1.msra.mxu0 0.0
      %265 = vmatprep.subr.mxu0 0.0
      %266 = vmatpush1.msra.mxu0 0.0
      %267 = vmatprep.subr.mxu0 0.0
      %268 = vmatpush1.msra.mxu0 0.0
      %269 = vmatprep.subr.mxu0 0.0
      %270 = vmatpush1.msra.mxu0 0.0
      %271 = vmatprep.subr.mxu0 0.0
      %272 = vmatpush1.msra.mxu0 0.0
      %273 = vmatprep.mubr.f32.mxu0 0.0
      %274 = vmatmul.mubr.f32.gmra.mrb[0].mxu0 %v204
      %v275 = vpop.f32.mrb[0].mxu0
      %v276 = vadd.f32 0.0, %v275
      %v277 = vpop.f32.mrb[0].mxu0
      %278 = vdwg.mxu0
      %v279 = vmax.f32 %v276, 0.0
      %v280 = vld [vmem:[%s2] sm:$0x3]
      %vm281 = vcmask 15360
      %v283 = vsel %vm281, %v279, 0
      %v286 = vsel %vm178, %v280, 0
      %288 = vmatprep.subr.mxu0 0.0
      %289 = vmatpush1.msra.mxu0 %v286
      %290 = vmatprep.subr.mxu0 0.0
      %291 = vmatpush1.msra.mxu0 0.0
      %292 = vmatprep.subr.mxu0 0.0
      %293 = vmatpush1.msra.mxu0 0.0
      %294 = vmatprep.subr.mxu0 0.0
      %295 = vmatpush1.msra.mxu0 0.0
      %296 = vmatprep.subr.mxu0 0.0
      %297 = vmatpush1.msra.mxu0 0.0
      %298 = vmatprep.subr.mxu0 0.0
      %299 = vmatpush1.msra.mxu0 0.0
      %300 = vmatprep.subr.mxu0 0.0
      %301 = vmatpush1.msra.mxu0 0.0
      %302 = vmatprep.subr.mxu0 0.0
      %303 = vmatpush1.msra.mxu0 0.0
      %304 = vmatprep.subr.mxu0 0.0
      %305 = vmatpush1.msra.mxu0 0.0
      %306 = vmatprep.subr.mxu0 0.0
      %307 = vmatpush1.msra.mxu0 0.0
      %308 = vmatprep.subr.mxu0 0.0
      %309 = vmatpush1.msra.mxu0 0.0
      %310 = vmatprep.subr.mxu0 0.0
      %311 = vmatpush1.msra.mxu0 0.0
      %312 = vmatprep.subr.mxu0 0.0
      %313 = vmatpush1.msra.mxu0 0.0
      %314 = vmatprep.subr.mxu0 0.0
      %315 = vmatpush1.msra.mxu0 0.0
      %316 = vmatprep.subr.mxu0 0.0
      %317 = vmatpush1.msra.mxu0 0.0
      %318 = vmatprep.subr.mxu0 0.0
      %319 = vmatpush1.msra.mxu0 0.0
      %320 = vmatprep.subr.mxu0 0.0
      %321 = vmatpush1.msra.mxu0 0.0
      %322 = vmatprep.subr.mxu0 0.0
      %323 = vmatpush1.msra.mxu0 0.0
      %324 = vmatprep.subr.mxu0 0.0
      %325 = vmatpush1.msra.mxu0 0.0
      %326 = vmatprep.subr.mxu0 0.0
      %327 = vmatpush1.msra.mxu0 0.0
      %328 = vmatprep.subr.mxu0 0.0
      %329 = vmatpush1.msra.mxu0 0.0
      %330 = vmatprep.subr.mxu0 0.0
      %331 = vmatpush1.msra.mxu0 0.0
      %332 = vmatprep.subr.mxu0 0.0
      %333 = vmatpush1.msra.mxu0 0.0
      %334 = vmatprep.subr.mxu0 0.0
      %335 = vmatpush1.msra.mxu0 0.0
      %336 = vmatprep.subr.mxu0 0.0
      %337 = vmatpush1.msra.mxu0 0.0
      %338 = vmatprep.subr.mxu0 0.0
      %339 = vmatpush1.msra.mxu0 0.0
      %340 = vmatprep.subr.mxu0 0.0
      %341 = vmatpush1.msra.mxu0 0.0
      %342 = vmatprep.subr.mxu0 0.0
      %343 = vmatpush1.msra.mxu0 0.0
      %344 = vmatprep.subr.mxu0 0.0
      %345 = vmatpush1.msra.mxu0 0.0
      %346 = vmatprep.subr.mxu0 0.0
      %347 = vmatpush1.msra.mxu0 0.0
      %348 = vmatprep.subr.mxu0 0.0
      %349 = vmatpush1.msra.mxu0 0.0
      %350 = vmatprep.subr.mxu0 0.0
      %351 = vmatpush1.msra.mxu0 0.0
      %352 = vmatprep.mubr.f32.mxu0 0.0
      %353 = vmatmul.mubr.f32.gmra.mrb[0].mxu0 %v283
      %v354 = vpop.f32.mrb[0].mxu0
      %v355 = vadd.f32 0.0, %v354
      %v356 = vpop.f32.mrb[0].mxu0
      %357 = vdwg.mxu0
      %v358 = vxor.u32 %v355, 2147483648
      %v359 = vmul.f32 %v358, 1.442695
      %v360 = vpow.pop %v359
      %v361 = vadd.f32 %v360, 1.0
      %v362 = vrcp.pop %v361
      %v363 = vmul.f32 1.0, %v362
      %v364 = vlaneseq
      %v365 = vshrl.u32 %v364, 7
      %v366 = vsub.s32 0, %v365
      %v367 = vrot.slane %v363, %v366
      %369 = vbcast.lane.b32.xlu0 %v367, 256
      %v370 = vpop.permute.xlu0 %369
      %s372 = sor.u32 256, 8
      %373 = vbcast.lane.b32.xlu0 %v367, %s372
      %v374 = vpop.permute.xlu0 %373
      %v375 = vmul.f32 %v171, %v370
      %v376 = vmul.f32 %v172, %v370
      %v377 = vmul.f32 %v173, %v374
      %v378 = vmul.f32 %v174, %v374
      %379 = vst [vmem:[%s170] sm:$0xff] %v375
      %380 = vst [vmem:[%s170 + $0x8] sm:$0xff] %v376
      %381 = vst [vmem:[%s170 + $0x10] sm:$0x3] %v377
      %382 = vst [vmem:[%s170 + $0x18] sm:$0x3] %v378
      %p383 = scmp.lt.s32.totalorder %s14, 1
      %s384 = scalar_select %p383, %s14, 1
      %s385 = smul.addr %s384, 4
      %s386 = smul.addr %s385, 8
      %s387 = scalar_lea.vmem %s3, %s386
      // Predicated region
      $region33: #{tpu_custom_call.1} parent=31 // pred_check
        %p388 = pneg %p100
      $region34: #{tpu_custom_call.1} parent=31 // pred_check_branch
        %390 = sbr.rel (%p388) target = $region36
      $region35: #{tpu_custom_call.1} parent=31 // pred_region
        _
      $region36: #{tpu_custom_call.1} parent=31 // pred_fallthru
        _
    $region32: #{tpu_custom_call.1} parent=5 // pred_fallthru
      _
    %p391 = scmp.le.s32.totalorder 2, %s9
    // Predicated region
    $region37: #{tpu_custom_call.1} parent=5 // pred_check
      %p392 = pneg %p391
    $region38: #{tpu_custom_call.1} parent=5 // pred_check_branch
      %394 = sbr.rel (%p392) target = $region40
    $region39: #{tpu_custom_call.1} parent=5 // pred_region
      %s395 = ssub.s32 %s9, 2
      // Predicated region
      $region41: #{tpu_custom_call.1} parent=39 // pred_check
        %p396 = pneg %p106
      $region42: #{tpu_custom_call.1} parent=39 // pred_check_branch
        %398 = sbr.rel (%p396) target = $region44
      $region43: #{tpu_custom_call.1} parent=39 // pred_region
        %p399 = scmp.lt.s32.totalorder %s15, 1
        %s400 = scalar_select %p399, %s15, 1
        %s401 = smul.addr %s400, 4
        %s402 = smul.addr %s401, 8
        %s403 = scalar_lea.vmem %s3, %s402
      $region44: #{tpu_custom_call.1} parent=39 // pred_fallthru
        _
    $region40: #{tpu_custom_call.1} parent=5 // pred_fallthru
      _
  $region6: #{tpu_custom_call.1} parent=0 // loop_footer
    %s13 = sadd.s32 1, %s9
  $region7: #{tpu_custom_call.1} parent=0 // loop_footer_branch
    %8 = sbr.rel target = $region3
  $region8: #{tpu_custom_call.1} parent=0 // loop_exit
    _

</llo_original>
